<compile_context>
chip_gen: v5e
topology: v5e:2x2
jax: 0.10.0
libtpu: 0.0.40
codegen_flags: <defaults>
</compile_context>

<pallas_src>
import functools

import jax
import jax.numpy as jnp
import numpy as np
from jax.experimental import pallas as pl
from jax.experimental.pallas import tpu as pltpu

_LANE = 128
_SUBLANE = 8
_MAX_TN = 32 * 1024               # lane-tile ceiling (review: 8k-32k lanes)
_VMEM_BUDGET = 20 * 1024 * 1024   # bytes for blocks + accumulators (v7x-safe)
_VMEM_LIMIT = 32 * 1024 * 1024    # explicit scoped-VMEM limit (<= v7x physical)


def _cdiv(a, b):
    return (a + b - 1) // b


def _round_up(x, m):
    return _cdiv(x, m) * m


def _neg_pad(dtype):
    """Dtype-aware 'very negative' logits pad (safe for f16/bf16/f32, no -inf/NaN)."""
    dtype = jnp.dtype(dtype)
    if jnp.issubdtype(dtype, jnp.floating):
        return float(jnp.finfo(dtype).min) / 2
    return -(2 ** 30)


def _plan_tiles(n, per_lane_bytes, requested):
    """Pick (n_split, grid_n, tn, n_pad): big lane tiles, 2-way batch split for v7x."""
    cap = (_VMEM_BUDGET // per_lane_bytes) // _LANE * _LANE
    cap = max(_LANE, min(_MAX_TN, cap))
    if requested is not None:
        cap = max(_LANE, min(cap, _round_up(requested, _LANE)))
    n_split = 2 if n >= 2 * _LANE else 1          # keep both v7x TensorCores busy
    n_per_core = _cdiv(n, n_split)
    grid_n = _cdiv(n_per_core, cap)
    tn = _round_up(_cdiv(n_per_core, grid_n), _LANE)
    n_pad = n_split * grid_n * tn
    return n_split, grid_n, tn, n_pad


# ---------------------------------------------------------------------------
# Kernels (lane-dense layout: class dim on sublanes, batch dim on lanes,
# all heads in one block; per-core batch reduction; finalize once per core)
# ---------------------------------------------------------------------------
def _hard_kernel(logits_ref, tgt_ref, lp_out_ref, cnt_out_ref, lacc_ref, cacc_ref):
    ni = pl.program_id(1)

    @pl.when(ni == 0)
    def _():
        lacc_ref[...] = jnp.zeros_like(lacc_ref)
        cacc_ref[...] = jnp.zeros_like(cacc_ref)

    x = logits_ref[...].astype(jnp.float32)          # (H, C, Tn)
    t = tgt_ref[...]                                 # (H, 1, Tn) int32, -1 => padding
    h, c, tn = x.shape

    # log_softmax along the class (sublane) axis.
    m = jnp.max(x, axis=1, keepdims=True)                               # (H, 1, Tn)
    lse = m + jnp.log(jnp.sum(jnp.exp(x - m), axis=1, keepdims=True))   # (H, 1, Tn)
    log_probs = x - lse                                                 # (H, C, Tn)

    # One-hot gather of the target class; padded samples (t == -1) match nothing.
    row = jax.lax.broadcasted_iota(jnp.int32, (h, c, tn), 1)
    onehot = jnp.where(row == t, 1.0, 0.0)                              # (H, C, Tn)

    # Raw 2-D partials; both reductions and the class weighting are deferred.
    lacc_ref[...] += onehot * log_probs
    cacc_ref[...] += onehot

    @pl.when(ni == pl.num_programs(1) - 1)
    def _():
        lp_out_ref[0] = jnp.sum(lacc_ref[...], axis=-1)    # (H, C) picked log-probs
        cnt_out_ref[0] = jnp.sum(cacc_ref[...], axis=-1)   # (H, C) picked counts


def _soft_kernel(logits_ref, tgt_ref, out_ref, lacc_ref):
    ni = pl.program_id(1)

    @pl.when(ni == 0)
    def _():
        lacc_ref[...] = jnp.zeros_like(lacc_ref)

    x = logits_ref[...].astype(jnp.float32)          # (H, C, Tn)
    t = tgt_ref[...].astype(jnp.float32)             # (H, C, Tn), 0 on all padding

    m = jnp.max(x, axis=1, keepdims=True)
    lse = m + jnp.log(jnp.sum(jnp.exp(x - m), axis=1, keepdims=True))
    lacc_ref[...] += t * (x - lse)

    @pl.when(ni == pl.num_programs(1) - 1)
    def _():
        out_ref[0] = jnp.sum(lacc_ref[...], axis=-1)       # (H, C)


# ---------------------------------------------------------------------------
# Host-side relayout + fused pallas_call wrappers
# ---------------------------------------------------------------------------
def _stack_lane_dense(mats, c_pad, n_pad, n, pad_value):
    """[(N, C_i)] -> (H, C_pad, N_pad), batch on lanes, native dtype preserved."""
    def prep(x):
        xt = jnp.transpose(x)                       # (C_i, N)
        return jnp.pad(
            xt, ((0, c_pad - xt.shape[0]), (0, n_pad - n)), constant_values=pad_value
        )
    return jnp.stack([prep(x) for x in mats], axis=0)


def _stack_weights(weights, c_pad):
    """[(C_i,)] -> (H, C_pad) f32, zeros on padded classes (wrapper epilogue only)."""
    return jnp.stack(
        [jnp.pad(w.astype(jnp.float32), (0, c_pad - w.shape[0])) for w in weights],
        axis=0,
    )


def _fused_hard_ce(logits_list, hard_targets, weights, block_n):
    h = len(logits_list)
    n = logits_list[0].shape[0]
    dtype = logits_list[0].dtype
    isz = jnp.dtype(dtype).itemsize
    c_pad = _round_up(max(max(x.shape[1] for x in logits_list), _SUBLANE), _SUBLANE)

    # Per-lane VMEM bytes: double-buffered logits + targets, 2 f32 accumulators.
    per_lane = 2 * (h * c_pad * isz + h * 4) + 2 * (h * c_pad * 4)
    n_split, grid_n, tn, n_pad = _plan_tiles(n, per_lane, block_n)

    logits = _stack_lane_dense(logits_list, c_pad, n_pad, n, _neg_pad(dtype))
    tgt = hard_targets.astype(jnp.int32).T                               # (H, N)
    tgt = jnp.pad(tgt, ((0, 0), (0, n_pad - n)), constant_values=-1)[:, None, :]

    lp_part, cnt_part = pl.pallas_call(
        _hard_kernel,
        out_shape=(
            jax.ShapeDtypeStruct((n_split, h, c_pad), jnp.float32),
            jax.ShapeDtypeStruct((n_split, h, c_pad), jnp.float32),
        ),
        grid_spec=pltpu.PrefetchScalarGridSpec(
            num_scalar_prefetch=0,
            grid=(n_split, grid_n),
            in_specs=[
                pl.BlockSpec((h, c_pad, tn), lambda s, ni: (0, 0, s * grid_n + ni)),
                pl.BlockSpec((h, 1, tn), lambda s, ni: (0, 0, s * grid_n + ni)),
            ],
            out_specs=(
                pl.BlockSpec((1, h, c_pad), lambda s, ni: (s, 0, 0)),
                pl.BlockSpec((1, h, c_pad), lambda s, ni: (s, 0, 0)),
            ),
            scratch_shapes=[
                pltpu.VMEM((h, c_pad, tn), jnp.float32),
                pltpu.VMEM((h, c_pad, tn), jnp.float32),
            ],
        ),
        compiler_params=pltpu.CompilerParams(
            dimension_semantics=("parallel", "arbitrary"),
            vmem_limit_bytes=_VMEM_LIMIT,
        ),
    )(logits, tgt)

    # Tiny epilogue: combine cores, apply class weights, normalize per head.
    w = _stack_weights(weights, c_pad)              # (H, C)
    lp_sum = jnp.sum(lp_part, axis=0)               # (H, C)
    cnt_sum = jnp.sum(cnt_part, axis=0)             # (H, C)
    num = -jnp.sum(w * lp_sum, axis=-1)             # (H,)
    den = jnp.sum(w * cnt_sum, axis=-1)             # (H,)
    return jnp.sum(num / den)


def _fused_soft_ce(logits_list, soft_targets, weights, block_n):
    h = len(logits_list)
    n = logits_list[0].shape[0]
    dtype = logits_list[0].dtype
    isz = jnp.dtype(dtype).itemsize
    t_isz = jnp.dtype(soft_targets[0].dtype).itemsize
    c_pad = _round_up(max(max(x.shape[1] for x in logits_list), _SUBLANE), _SUBLANE)

    # Per-lane VMEM bytes: double-buffered logits + soft targets, 1 f32 accumulator.
    per_lane = 2 * (h * c_pad * (isz + t_isz)) + h * c_pad * 4
    n_split, grid_n, tn, n_pad = _plan_tiles(n, per_lane, block_n)

    logits = _stack_lane_dense(logits_list, c_pad, n_pad, n, _neg_pad(dtype))
    tgt = _stack_lane_dense(soft_targets, c_pad, n_pad, n, 0)

    part = pl.pallas_call(
        _soft_kernel,
        out_shape=jax.ShapeDtypeStruct((n_split, h, c_pad), jnp.float32),
        grid_spec=pltpu.PrefetchScalarGridSpec(
            num_scalar_prefetch=0,
            grid=(n_split, grid_n),
            in_specs=[
                pl.BlockSpec((h, c_pad, tn), lambda s, ni: (0, 0, s * grid_n + ni)),
                pl.BlockSpec((h, c_pad, tn), lambda s, ni: (0, 0, s * grid_n + ni)),
            ],
            out_specs=pl.BlockSpec((1, h, c_pad), lambda s, ni: (s, 0, 0)),
            scratch_shapes=[pltpu.VMEM((h, c_pad, tn), jnp.float32)],
        ),
        compiler_params=pltpu.CompilerParams(
            dimension_semantics=("parallel", "arbitrary"),
            vmem_limit_bytes=_VMEM_LIMIT,
        ),
    )(logits, tgt)

    w = _stack_weights(weights, c_pad)              # (H, C)
    s = jnp.sum(part, axis=0)                       # (H, C)
    return jnp.sum(-w * s) / jnp.float32(n)


@functools.partial(jax.jit, static_argnames=("is_soft_target", "block_n"))
def multi_label_cross_entropy_loss(
    logits_list, true_labels, label_class_weights, is_soft_target=False, block_n=None
):
    """Forward pass of MultiLabelCrossEntropyLoss (sum of per-head losses)."""
    if is_soft_target:
        return _fused_soft_ce(logits_list, true_labels, label_class_weights, block_n)
    return _fused_hard_ce(logits_list, true_labels, label_class_weights, block_n)


# ---------------------------------------------------------------------------
# Pure-JAX reference (correctness check)
# ---------------------------------------------------------------------------
def _ref_loss(logits_list, true_labels, weights, is_soft_target):
    total = jnp.float32(0.0)
    for i, x in enumerate(logits_list):
        w = weights[i].astype(jnp.float32)
        lp = jax.nn.log_softmax(x.astype(jnp.float32), axis=-1)
        if is_soft_target:
            tgt = true_labels[i].astype(jnp.float32)
            total += jnp.mean(jnp.sum(-tgt * (lp * w[None, :]), axis=-1))
        else:
            t = true_labels[:, i]
            picked_lp = jnp.take_along_axis(lp, t[:, None], axis=-1)[:, 0]
            picked_w = w[t]
            total += jnp.sum(-picked_w * picked_lp) / jnp.sum(picked_w)
    return total


# ---------------------------------------------------------------------------
# Main
# ---------------------------------------------------------------------------
if __name__ == "__main__":
    def run_case(batch, num_classes, seed):
        num_labels = len(num_classes)
        keys = jax.random.split(jax.random.PRNGKey(seed), 4 * num_labels)

        logits_list = [
            jax.random.normal(keys[i], (batch, num_classes[i]), dtype=jnp.float32)
            for i in range(num_labels)
        ]
        label_class_weights = [
            jax.random.uniform(keys[num_labels + i], (num_classes[i],),
                               dtype=jnp.float32, minval=0.5, maxval=1.5)
            for i in range(num_labels)
        ]
        hard_targets = jnp.stack(
            [jax.random.randint(keys[2 * num_labels + i], (batch,), 0, num_classes[i])
             for i in range(num_labels)], axis=1).astype(jnp.int32)
        soft_targets = [
            jax.nn.softmax(
                jax.random.normal(keys[3 * num_labels + i],
                                  (batch, num_classes[i]), dtype=jnp.float32), axis=-1)
            for i in range(num_labels)
        ]

        loss_hard = jax.block_until_ready(multi_label_cross_entropy_loss(
            logits_list, hard_targets, label_class_weights, is_soft_target=False))
        ref_hard = _ref_loss(logits_list, hard_targets, label_class_weights, False)
        np.testing.assert_allclose(np.asarray(loss_hard), np.asarray(ref_hard),
                                   rtol=2e-5, atol=2e-5)

        loss_soft = jax.block_until_ready(multi_label_cross_entropy_loss(
            logits_list, soft_targets, label_class_weights, is_soft_target=True))
        ref_soft = _ref_loss(logits_list, soft_targets, label_class_weights, True)
        np.testing.assert_allclose(np.asarray(loss_soft), np.asarray(ref_soft),
                                   rtol=2e-5, atol=2e-5)

    # Small case (single batch tile, single split).
    run_case(batch=8, num_classes=[4, 5, 6], seed=0)
    # Slightly larger case to exercise the 2-way parallel batch split + padding.
    run_case(batch=384, num_classes=[4, 5, 6], seed=1)

    print("KERNEL_OK")
</pallas_src>

<mosaic_0001>
module attributes {stable_mosaic.version = 11 : i64} {
  func.func @_hard_kernel(%arg0: i32, %arg1: i32, %arg2: memref<3x8x128xf32, #tpu.memory_space<vmem>>, %arg3: memref<3x1x128xi32, #tpu.memory_space<vmem>>, %arg4: memref<1x3x8xf32, #tpu.memory_space<vmem>>, %arg5: memref<1x3x8xf32, #tpu.memory_space<vmem>>, %arg6: memref<3x8x128xf32, #tpu.memory_space<vmem>>, %arg7: memref<3x8x128xf32, #tpu.memory_space<vmem>>) attributes {dimension_semantics = [#tpu.dimension_semantics<parallel>, #tpu.dimension_semantics<arbitrary>], iteration_bounds = array<i64: 1, 1>, scalar_prefetch = 0 : i64, scratch_operands = 2 : i64, tpu.core_type = #tpu.core_type<tc>, window_params = [{transform_indices = @transform_0, window_bounds = array<i64: 3, 8, 128>}, {transform_indices = @transform_1, window_bounds = array<i64: 3, 1, 128>}, {transform_indices = @transform_2, window_bounds = array<i64: 1, 3, 8>}, {transform_indices = @transform_3, window_bounds = array<i64: 1, 3, 8>}]} {
    %c0_i32 = arith.constant 0 : i32
    %0 = arith.cmpi eq, %arg1, %c0_i32 : i32
    %1 = arith.extui %0 : i1 to i32
    %c0_i32_0 = arith.constant 0 : i32
    %2 = arith.cmpi ne, %1, %c0_i32_0 : i32
    scf.if %2 {
      %cst_23 = arith.constant 0.000000e+00 : f32
      %32 = vector.broadcast %cst_23 : f32 to vector<3x8x128xf32>
      %c0_24 = arith.constant 0 : index
      %c0_25 = arith.constant 0 : index
      %c0_26 = arith.constant 0 : index
      %33 = vector.load %arg6[%c0_24, %c0_25, %c0_26] : memref<3x8x128xf32, #tpu.memory_space<vmem>>, vector<3x8x128xf32>
      tpu.vector_store %arg6[%c0_24, %c0_25, %c0_26], %32 {strides = array<i32>} : memref<3x8x128xf32, #tpu.memory_space<vmem>>, vector<3x8x128xf32>,
      %cst_27 = arith.constant 0.000000e+00 : f32
      %34 = vector.broadcast %cst_27 : f32 to vector<3x8x128xf32>
      %c0_28 = arith.constant 0 : index
      %c0_29 = arith.constant 0 : index
      %c0_30 = arith.constant 0 : index
      %35 = vector.load %arg7[%c0_28, %c0_29, %c0_30] : memref<3x8x128xf32, #tpu.memory_space<vmem>>, vector<3x8x128xf32>
      tpu.vector_store %arg7[%c0_28, %c0_29, %c0_30], %34 {strides = array<i32>} : memref<3x8x128xf32, #tpu.memory_space<vmem>>, vector<3x8x128xf32>,
    } else {
    }
    %c0 = arith.constant 0 : index
    %c0_1 = arith.constant 0 : index
    %c0_2 = arith.constant 0 : index
    %3 = vector.load %arg2[%c0, %c0_1, %c0_2] : memref<3x8x128xf32, #tpu.memory_space<vmem>>, vector<3x8x128xf32>
    %c0_3 = arith.constant 0 : index
    %c0_4 = arith.constant 0 : index
    %c0_5 = arith.constant 0 : index
    %4 = vector.load %arg3[%c0_3, %c0_4, %c0_5] : memref<3x1x128xi32, #tpu.memory_space<vmem>>, vector<3x1x128xi32>
    %cst = arith.constant dense<0xFF800000> : vector<3x128xf32>
    %5 = vector.multi_reduction <maximumf>, %3, %cst [1] : vector<3x8x128xf32> to vector<3x128xf32>
    %6 = vector.shape_cast %5 : vector<3x128xf32> to vector<3x1x128xf32>
    %7 = vector.broadcast %6 : vector<3x1x128xf32> to vector<3x8x128xf32>
    %8 = arith.subf %3, %7 : vector<3x8x128xf32>
    %9 = math.exp %8 : vector<3x8x128xf32>
    %cst_6 = arith.constant dense<0.000000e+00> : vector<3x128xf32>
    %10 = vector.multi_reduction <add>, %9, %cst_6 [1] : vector<3x8x128xf32> to vector<3x128xf32>
    %11 = vector.shape_cast %10 : vector<3x128xf32> to vector<3x1x128xf32>
    %12 = math.log %11 : vector<3x1x128xf32>
    %13 = arith.addf %6, %12 : vector<3x1x128xf32>
    %14 = vector.broadcast %13 : vector<3x1x128xf32> to vector<3x8x128xf32>
    %15 = arith.subf %3, %14 : vector<3x8x128xf32>
    %16 = tpu.iota {dimensions = array<i32: 1>} : vector<3x8x128xi32>
    %17 = vector.broadcast %4 : vector<3x1x128xi32> to vector<3x8x128xi32>
    %18 = arith.cmpi eq, %16, %17 : vector<3x8x128xi32>
    %cst_7 = arith.constant 1.000000e+00 : f32
    %cst_8 = arith.constant 0.000000e+00 : f32
    %19 = vector.broadcast %cst_7 : f32 to vector<3x8x128xf32>
    %20 = vector.broadcast %cst_8 : f32 to vector<3x8x128xf32>
    %21 = arith.select %18, %19, %20 : vector<3x8x128xi1>, vector<3x8x128xf32>
    %c0_9 = arith.constant 0 : index
    %c0_10 = arith.constant 0 : index
    %c0_11 = arith.constant 0 : index
    %22 = vector.load %arg6[%c0_9, %c0_10, %c0_11] : memref<3x8x128xf32, #tpu.memory_space<vmem>>, vector<3x8x128xf32>
    %23 = arith.mulf %21, %15 : vector<3x8x128xf32>
    %24 = arith.addf %22, %23 : vector<3x8x128xf32>
    %c0_12 = arith.constant 0 : index
    %c0_13 = arith.constant 0 : index
    %c0_14 = arith.constant 0 : index
    %25 = vector.load %arg6[%c0_12, %c0_13, %c0_14] : memref<3x8x128xf32, #tpu.memory_space<vmem>>, vector<3x8x128xf32>
    tpu.vector_store %arg6[%c0_12, %c0_13, %c0_14], %24 {strides = array<i32>} : memref<3x8x128xf32, #tpu.memory_space<vmem>>, vector<3x8x128xf32>,
    %c0_15 = arith.constant 0 : index
    %c0_16 = arith.constant 0 : index
    %c0_17 = arith.constant 0 : index
    %26 = vector.load %arg7[%c0_15, %c0_16, %c0_17] : memref<3x8x128xf32, #tpu.memory_space<vmem>>, vector<3x8x128xf32>
    %27 = arith.addf %26, %21 : vector<3x8x128xf32>
    %c0_18 = arith.constant 0 : index
    %c0_19 = arith.constant 0 : index
    %c0_20 = arith.constant 0 : index
    %28 = vector.load %arg7[%c0_18, %c0_19, %c0_20] : memref<3x8x128xf32, #tpu.memory_space<vmem>>, vector<3x8x128xf32>
    tpu.vector_store %arg7[%c0_18, %c0_19, %c0_20], %27 {strides = array<i32>} : memref<3x8x128xf32, #tpu.memory_space<vmem>>, vector<3x8x128xf32>,
    %c0_i32_21 = arith.constant 0 : i32
    %29 = arith.cmpi eq, %arg1, %c0_i32_21 : i32
    %30 = arith.extui %29 : i1 to i32
    %c0_i32_22 = arith.constant 0 : i32
    %31 = arith.cmpi ne, %30, %c0_i32_22 : i32
    scf.if %31 {
      %c0_23 = arith.constant 0 : index
      %c0_24 = arith.constant 0 : index
      %c0_25 = arith.constant 0 : index
      %32 = vector.load %arg6[%c0_23, %c0_24, %c0_25] : memref<3x8x128xf32, #tpu.memory_space<vmem>>, vector<3x8x128xf32>
      %cst_26 = arith.constant dense<0.000000e+00> : vector<3x8xf32>
      %33 = vector.multi_reduction <add>, %32, %cst_26 [2] : vector<3x8x128xf32> to vector<3x8xf32>
      %c0_27 = arith.constant 0 : index
      %c0_28 = arith.constant 0 : index
      %c0_29 = arith.constant 0 : index
      %34 = vector.load %arg4[%c0_27, %c0_28, %c0_29] : memref<1x3x8xf32, #tpu.memory_space<vmem>>, vector<1x3x8xf32>
      %35 = vector.shape_cast %34 : vector<1x3x8xf32> to vector<3x8xf32>
      %36 = vector.shape_cast %33 : vector<3x8xf32> to vector<1x3x8xf32>
      tpu.vector_store %arg4[%c0_27, %c0_28, %c0_29], %36 {strides = array<i32>} : memref<1x3x8xf32, #tpu.memory_space<vmem>>, vector<1x3x8xf32>,
      %c0_30 = arith.constant 0 : index
      %c0_31 = arith.constant 0 : index
      %c0_32 = arith.constant 0 : index
      %37 = vector.load %arg7[%c0_30, %c0_31, %c0_32] : memref<3x8x128xf32, #tpu.memory_space<vmem>>, vector<3x8x128xf32>
      %cst_33 = arith.constant dense<0.000000e+00> : vector<3x8xf32>
      %38 = vector.multi_reduction <add>, %37, %cst_33 [2] : vector<3x8x128xf32> to vector<3x8xf32>
      %c0_34 = arith.constant 0 : index
      %c0_35 = arith.constant 0 : index
      %c0_36 = arith.constant 0 : index
      %39 = vector.load %arg5[%c0_34, %c0_35, %c0_36] : memref<1x3x8xf32, #tpu.memory_space<vmem>>, vector<1x3x8xf32>
      %40 = vector.shape_cast %39 : vector<1x3x8xf32> to vector<3x8xf32>
      %41 = vector.shape_cast %38 : vector<3x8xf32> to vector<1x3x8xf32>
      tpu.vector_store %arg5[%c0_34, %c0_35, %c0_36], %41 {strides = array<i32>} : memref<1x3x8xf32, #tpu.memory_space<vmem>>, vector<1x3x8xf32>,
    } else {
    }
    return
  }
  func.func @transform_0(%arg0: i32, %arg1: i32) -> (i32, i32, i32) {
    %c1_i32 = arith.constant 1 : i32
    %0 = arith.muli %arg0, %c1_i32 : i32
    %1 = arith.addi %0, %arg1 : i32
    %c0_i32 = arith.constant 0 : i32
    %c0_i32_0 = arith.constant 0 : i32
    %c0_i32_1 = arith.constant 0 : i32
    return %c0_i32, %c0_i32_0, %1 : i32, i32, i32
  }
  func.func @transform_1(%arg0: i32, %arg1: i32) -> (i32, i32, i32) {
    %c1_i32 = arith.constant 1 : i32
    %0 = arith.muli %arg0, %c1_i32 : i32
    %1 = arith.addi %0, %arg1 : i32
    %c0_i32 = arith.constant 0 : i32
    %c0_i32_0 = arith.constant 0 : i32
    %c0_i32_1 = arith.constant 0 : i32
    return %c0_i32, %c0_i32_0, %1 : i32, i32, i32
  }
  func.func @transform_2(%arg0: i32, %arg1: i32) -> (i32, i32, i32) {
    %c0_i32 = arith.constant 0 : i32
    %c0_i32_0 = arith.constant 0 : i32
    %c0_i32_1 = arith.constant 0 : i32
    return %arg0, %c0_i32, %c0_i32_0 : i32, i32, i32
  }
  func.func @transform_3(%arg0: i32, %arg1: i32) -> (i32, i32, i32) {
    %c0_i32 = arith.constant 0 : i32
    %c0_i32_0 = arith.constant 0 : i32
    %c0_i32_1 = arith.constant 0 : i32
    return %arg0, %c0_i32, %c0_i32_0 : i32, i32, i32
  }
}

</mosaic_0001>

<llo_original>
// kernel: multi_label_cross_entropy_loss.1
$region0: #{multi_label_cross_entropy_loss.1}
  #allocation0 [shape = 'u32[]', space=smem, size = 0x4, offset = 0x4, fixed_abs, tag = 'smem constant byte address 0x4 - core index']
  #allocation1 [shape = 'u32[72,128]{1,0:T(1,128)}', space=vmem, size = 0x9000, scoped, tag = 'internal scratch']
  #allocation2 [shape = 'f32[3,8,128]{2,1,0:T(8,128)}', space=vmem, size = 0x3000, scoped, tag = 'scratch operand']
  #allocation3 [shape = 'f32[3,8,128]{2,1,0:T(8,128)}', space=vmem, size = 0x3000, scoped, tag = 'scratch operand']
  %s0 = inlined_call_operand.vmem [shape: f32[3,8,128], index: 0, kind: input, shape index: {}]
  %s1 = inlined_call_operand.vmem [shape: s32[3,1,128], index: 1, kind: input, shape index: {}]
  %s2 = inlined_call_operand.vmem [shape: f32[1,3,8], index: 2, kind: output, shape index: {0}]
  %s3 = inlined_call_operand.vmem [shape: f32[1,3,8], index: 3, kind: output, shape index: {1}]
  %4 = xla_tuple %s2, %s3
  %s5 = sld [smem:[#allocation0]]
  $region34: #{multi_label_cross_entropy_loss.1} parent=0
    _
  %s7 = ssub.s32 1, %s5
  %s8 = scalar_select 0, %s7, %s5
  // Predicated region
  $region2: #{multi_label_cross_entropy_loss.1} parent=0 // pred_check
    _
  $region3: #{multi_label_cross_entropy_loss.1} parent=0 // pred_check_branch
    %10 = sbr.rel (0) target = $region5
  $region4: #{multi_label_cross_entropy_loss.1} parent=0 // pred_region
    %s11 = sadd.s32 0, 0
    %p12 = scmp.lt.s32.totalorder %s11, 0
    %s13 = scalar_select %p12, %s11, 0
    %s14 = smul.addr %s13, 8
    %s15 = scalar_lea.vmem %s0, %s14
    %s16 = sadd.s32 0, 0
  $region5: #{multi_label_cross_entropy_loss.1} parent=0 // pred_fallthru
    _
  // Predicated region
  $region6: #{multi_label_cross_entropy_loss.1} parent=0 // pred_check
    _
  $region7: #{multi_label_cross_entropy_loss.1} parent=0 // pred_check_branch
    %18 = sbr.rel (0) target = $region9
  $region8: #{multi_label_cross_entropy_loss.1} parent=0 // pred_region
    %s19 = sadd.s32 0, 0
    %p20 = scmp.lt.s32.totalorder %s19, 0
    %s21 = scalar_select %p20, %s19, 0
    %s22 = scalar_lea.vmem %s1, %s21
    %s23 = sadd.s32 0, 0
  $region9: #{multi_label_cross_entropy_loss.1} parent=0 // pred_fallthru
    _
  %s24 = sadd.s32 0, 0
  %p25 = scmp.lt.s32.totalorder %s24, 0
  %s26 = scalar_select %p25, %s24, 0
  %s27 = smul.addr %s26, 8
  %s28 = scalar_lea.vmem %s0, %s27
  %s29 = sadd.s32 0, 0
  %p30 = scmp.lt.s32.totalorder %s29, 0
  %s31 = scalar_select %p30, %s29, 0
  %s32 = scalar_lea.vmem %s1, %s31
  %s33 = sadd.s32 0, 0
  %p34 = scmp.lt.s32.totalorder %s33, 0
  %s35 = scalar_select %p34, %s33, 0
  %s36 = smul.addr %s35, 8
  %s37 = scalar_lea.vmem %s0, %s36
  %s38 = sadd.s32 0, 0
  %s39 = sadd.s32 0, 0
  %p40 = scmp.lt.s32.totalorder %s39, 0
  %s41 = scalar_select %p40, %s39, 0
  %s42 = scalar_lea.vmem %s1, %s41
  %s43 = sadd.s32 0, 0
  %p44 = scmp.eq.s32.totalorder 0, 0
  // Predicated region
  $region10: #{multi_label_cross_entropy_loss.1} parent=0 // pred_check
    %p45 = pneg %p44
  $region11: #{multi_label_cross_entropy_loss.1} parent=0 // pred_check_branch
    %47 = sbr.rel (%p45) target = $region13
  $region12: #{multi_label_cross_entropy_loss.1} parent=0 // pred_region
    %48 = vst [vmem:[#allocation2] sm:$0xff] 0.0
    %49 = vst [vmem:[#allocation2 + $0x8] sm:$0xff] 0.0
    %50 = vst [vmem:[#allocation2 + $0x10] sm:$0xff] 0.0
    %51 = vst [vmem:[#allocation3] sm:$0xff] 0.0
    %52 = vst [vmem:[#allocation3 + $0x8] sm:$0xff] 0.0
    %53 = vst [vmem:[#allocation3 + $0x10] sm:$0xff] 0.0
  $region13: #{multi_label_cross_entropy_loss.1} parent=0 // pred_fallthru
    _
  %v54 = vld [vmem:[%s37] sm:$0xff]
  %v55 = vld [vmem:[%s37 + $0x8] sm:$0xff]
  %v56 = vld [vmem:[%s37 + $0x10] sm:$0xff]
  %v57 = vld [vmem:[%s42] sm:$0x1]
  %v58 = vld [vmem:[%s42 + $0x1] sm:$0x1]
  %v59 = vld [vmem:[%s42 + $0x2] sm:$0x1]
  %v60 = vrot.slane %v54, 4
  %v61 = vmax.f32 %v54, %v60
  %v62 = vrot.slane %v61, 2
  %v63 = vmax.f32 %v61, %v62
  %v64 = vrot.slane %v63, 1
  %v65 = vmax.f32 %v63, %v64
  %v66 = vrot.slane %v55, 4
  %v67 = vmax.f32 %v55, %v66
  %v68 = vrot.slane %v67, 2
  %v69 = vmax.f32 %v67, %v68
  %v70 = vrot.slane %v69, 1
  %v71 = vmax.f32 %v69, %v70
  %v72 = vrot.slane %v56, 4
  %v73 = vmax.f32 %v56, %v72
  %v74 = vrot.slane %v73, 2
  %v75 = vmax.f32 %v73, %v74
  %v76 = vrot.slane %v75, 1
  %v77 = vmax.f32 %v75, %v76
  %v78 = vsub.f32 %v54, %v65
  %v79 = vsub.f32 %v55, %v71
  %v80 = vsub.f32 %v56, %v77
  %v81 = vmul.f32 %v78, 1.442695
  %v82 = vpow.pop %v81
  %v83 = vmul.f32 %v79, 1.442695
  %v84 = vpow.pop %v83
  %v85 = vmul.f32 %v80, 1.442695
  %v86 = vpow.pop %v85
  %v87 = vrot.slane %v82, 4
  %v88 = vadd.f32 %v82, %v87
  %v89 = vrot.slane %v88, 2
  %v90 = vadd.f32 %v88, %v89
  %v91 = vrot.slane %v90, 1
  %v92 = vadd.f32 %v90, %v91
  %v93 = vrot.slane %v84, 4
  %v94 = vadd.f32 %v84, %v93
  %v95 = vrot.slane %v94, 2
  %v96 = vadd.f32 %v94, %v95
  %v97 = vrot.slane %v96, 1
  %v98 = vadd.f32 %v96, %v97
  %v99 = vrot.slane %v86, 4
  %v100 = vadd.f32 %v86, %v99
  %v101 = vrot.slane %v100, 2
  %v102 = vadd.f32 %v100, %v101
  %v103 = vrot.slane %v102, 1
  %v104 = vadd.f32 %v102, %v103
  %v105 = vlog2.pop %v92
  %v106 = vmul.f32 %v105, 0.6931472
  %v107 = vlog2.pop %v98
  %v108 = vmul.f32 %v107, 0.6931472
  %v109 = vlog2.pop %v104
  %v110 = vmul.f32 %v109, 0.6931472
  %v111 = vadd.f32 %v65, %v106
  %v112 = vadd.f32 %v71, %v108
  %v113 = vadd.f32 %v77, %v110
  %v114 = vsub.f32 %v54, %v111
  %v115 = vsub.f32 %v55, %v112
  %v116 = vsub.f32 %v56, %v113
  %v117 = vlaneseq
  %v118 = vshrl.u32 %v117, 7
  %v119 = vperm.slane %v57, 0
  %v120 = vperm.slane %v58, 0
  %v121 = vperm.slane %v59, 0
  %vm122 = vcmp.eq.s32.totalorder %v118, %v119
  %vm123 = vcmp.eq.s32.totalorder %v118, %v120
  %vm124 = vcmp.eq.s32.totalorder %v118, %v121
  %v125 = vsel %vm122, 1.0, 0.0
  %v126 = vsel %vm123, 1.0, 0.0
  %v127 = vsel %vm124, 1.0, 0.0
  %v128 = vld [vmem:[#allocation2] sm:$0xff]
  %v129 = vld [vmem:[#allocation2 + $0x8] sm:$0xff]
  %v130 = vld [vmem:[#allocation2 + $0x10] sm:$0xff]
  %v131 = vmul.f32 %v125, %v114
  %v132 = vmul.f32 %v126, %v115
  %v133 = vmul.f32 %v127, %v116
  %v134 = vadd.f32 %v128, %v131
  %v135 = vadd.f32 %v129, %v132
  %v136 = vadd.f32 %v130, %v133
  %137 = vst [vmem:[#allocation2] sm:$0xff] %v134
  %138 = vst [vmem:[#allocation2 + $0x8] sm:$0xff] %v135
  %139 = vst [vmem:[#allocation2 + $0x10] sm:$0xff] %v136
  %v140 = vld [vmem:[#allocation3] sm:$0xff]
  %v141 = vld [vmem:[#allocation3 + $0x8] sm:$0xff]
  %v142 = vld [vmem:[#allocation3 + $0x10] sm:$0xff]
  %v143 = vadd.f32 %v140, %v125
  %v144 = vadd.f32 %v141, %v126
  %v145 = vadd.f32 %v142, %v127
  %146 = vst [vmem:[#allocation3] sm:$0xff] %v143
  %147 = vst [vmem:[#allocation3 + $0x8] sm:$0xff] %v144
  %148 = vst [vmem:[#allocation3 + $0x10] sm:$0xff] %v145
  // Predicated region
  $region14: #{multi_label_cross_entropy_loss.1} parent=0 // pred_check
    %p149 = pneg %p44
  $region15: #{multi_label_cross_entropy_loss.1} parent=0 // pred_check_branch
    %151 = sbr.rel (%p149) target = $region17
  $region16: #{multi_label_cross_entropy_loss.1} parent=0 // pred_region
    %v152 = vld [vmem:[#allocation2] sm:$0xff]
    %v153 = vld [vmem:[#allocation2 + $0x8] sm:$0xff]
    %v154 = vld [vmem:[#allocation2 + $0x10] sm:$0xff]
    %155 = vadd.xlane.f32.xlu0 %v152
    %v156 = vpop.xlane.xlu0 %155
    %157 = vadd.xlane.f32.xlu0 %v153
    %v158 = vpop.xlane.xlu0 %157
    %159 = vadd.xlane.f32.xlu0 %v154
    %v160 = vpop.xlane.xlu0 %159
    %v164 = vlaneseq
    %v165 = vand.u32 %v164, 127
    %v166 = vperm.slane %v156, %v165
    %v167 = vperm.slane %v158, %v165
    %v168 = vperm.slane %v160, %v165
    %vm169 = vcmask 1041409
    %v170 = vsel %vm169, %v167, %v166
    %vm171 = vcmask 1042434
    %v172 = vsel %vm171, %v168, %v170
    %vm174 = vcmask 59392
    %175 = vst.msk [vmem:[%s2] sm:$0x7] %vm174, %v172
    %v176 = vld [vmem:[#allocation3] sm:$0xff]
    %v177 = vld [vmem:[#allocation3 + $0x8] sm:$0xff]
    %v178 = vld [vmem:[#allocation3 + $0x10] sm:$0xff]
    %179 = vadd.xlane.f32.xlu0 %v176
    %v180 = vpop.xlane.xlu0 %179
    %181 = vadd.xlane.f32.xlu0 %v177
    %v182 = vpop.xlane.xlu0 %181
    %183 = vadd.xlane.f32.xlu0 %v178
    %v184 = vpop.xlane.xlu0 %183
    %v188 = vperm.slane %v180, %v165
    %v189 = vperm.slane %v182, %v165
    %v190 = vperm.slane %v184, %v165
    %v191 = vsel %vm169, %v189, %v188
    %v192 = vsel %vm171, %v190, %v191
    %194 = vst.msk [vmem:[%s3] sm:$0x7] %vm174, %v192
  $region17: #{multi_label_cross_entropy_loss.1} parent=0 // pred_fallthru
    _
  // Predicated region
  $region18: #{multi_label_cross_entropy_loss.1} parent=0 // pred_check
    _
  $region19: #{multi_label_cross_entropy_loss.1} parent=0 // pred_check_branch
    %196 = sbr.rel (0) target = $region21
  $region20: #{multi_label_cross_entropy_loss.1} parent=0 // pred_region
    _
  $region21: #{multi_label_cross_entropy_loss.1} parent=0 // pred_fallthru
    _
  // Predicated region
  $region22: #{multi_label_cross_entropy_loss.1} parent=0 // pred_check
    _
  $region23: #{multi_label_cross_entropy_loss.1} parent=0 // pred_check_branch
    %198 = sbr.rel (0) target = $region25
  $region24: #{multi_label_cross_entropy_loss.1} parent=0 // pred_region
    _
  $region25: #{multi_label_cross_entropy_loss.1} parent=0 // pred_fallthru
    _
  // Predicated region
  $region26: #{multi_label_cross_entropy_loss.1} parent=0 // pred_check
    _
  $region27: #{multi_label_cross_entropy_loss.1} parent=0 // pred_check_branch
    %200 = sbr.rel (0) target = $region29
  $region28: #{multi_label_cross_entropy_loss.1} parent=0 // pred_region
    _
  $region29: #{multi_label_cross_entropy_loss.1} parent=0 // pred_fallthru
    _
  // Predicated region
  $region30: #{multi_label_cross_entropy_loss.1} parent=0 // pred_check
    _
  $region31: #{multi_label_cross_entropy_loss.1} parent=0 // pred_check_branch
    %202 = sbr.rel (0) target = $region33
  $region32: #{multi_label_cross_entropy_loss.1} parent=0 // pred_region
    _
  $region33: #{multi_label_cross_entropy_loss.1} parent=0 // pred_fallthru
    _

</llo_original>
